<compile_context>
chip_gen: v7x
topology: tpu7x:2x2x1
jax: 0.10.0
libtpu: 0.0.40
codegen_flags: <defaults>
</compile_context>

<pallas_src>
import functools
import math

import jax
import jax.numpy as jnp
from jax.experimental import pallas as pl
from jax.experimental.pallas import tpu as pltpu


# ---------------------------------------------------------------------------
# Fast path: VMEM-resident table, one-hot MXU gather, T tokens per grid step.
# ---------------------------------------------------------------------------
def _embed_onehot_kernel(tok_ref, table_ref, out_ref, *, scale):
    # tok_ref:   VMEM (T, 1) int32  -- token ids for this tile
    # table_ref: VMEM (V, E)        -- full embedding table (resident; index_map
    #                                  is constant so it is DMA'd once)
    # out_ref:   VMEM (T, E)        -- scaled output tile
    t = out_ref.shape[0]
    v = table_ref.shape[0]

    ids = tok_ref[...]                                          # (T, 1) int32
    vocab_iota = jax.lax.broadcasted_iota(jnp.int32, (t, v), 1)  # (T, V)
    # One-hot in {0, 1} so the MXU result is (bit-)exact per row; fold the
    # sqrt(E) scale in afterwards on the VPU (free filler in this regime).
    one_hot = (ids == vocab_iota).astype(jnp.float32)            # (T, V)
    gathered = jnp.dot(one_hot, table_ref[...].astype(jnp.float32),
                       preferred_element_type=jnp.float32)       # (T, E)
    out_ref[...] = (gathered * scale).astype(out_ref.dtype)


def _token_embedding_vmem(tokens_flat, emb_table, tile):
    n = tokens_flat.shape[0]
    v, e = emb_table.shape
    scale = math.sqrt(float(e))

    n_pad = pl.cdiv(n, tile) * tile
    toks = jnp.pad(tokens_flat, (0, n_pad - n)).reshape(n_pad, 1)

    out = pl.pallas_call(
        functools.partial(_embed_onehot_kernel, scale=scale),
        out_shape=jax.ShapeDtypeStruct((n_pad, e), emb_table.dtype),
        grid_spec=pltpu.PrefetchScalarGridSpec(
            num_scalar_prefetch=0,
            grid=(n_pad // tile,),
            in_specs=[
                # Token-id tile for this grid step.
                pl.BlockSpec((tile, 1), lambda i: (i, 0)),
                # Whole table, constant block index -> VMEM-resident.
                pl.BlockSpec((v, e), lambda i: (0, 0)),
            ],
            out_specs=pl.BlockSpec((tile, e), lambda i: (i, 0)),
        ),
        compiler_params=pltpu.CompilerParams(
            # Independent token tiles: lets v7x shard across both TensorCores.
            dimension_semantics=("parallel",),
            vmem_limit_bytes=32 * 1024 * 1024,
        ),
    )(toks, emb_table)

    return out[:n]


# ---------------------------------------------------------------------------
# Fallback path (large vocab / table does not fit VMEM): scalar-prefetch
# data-dependent row gather, 4-deep buffered to hide per-row DMA latency.
# ---------------------------------------------------------------------------
def _embed_row_kernel(tok_ref, row_ref, out_ref, *, scale):
    del tok_ref  # consumed by the index_maps only
    out_ref[...] = row_ref[...] * scale


def _token_embedding_hbm(tokens_flat, emb_table):
    # TODO(synk): replace with a manual double-buffered per-tile DMA gather
    # (memory_space=pl.ANY + make_async_copy) for very large vocabularies.
    n = tokens_flat.shape[0]
    v, e = emb_table.shape
    scale = math.sqrt(float(e))

    grid_spec = pltpu.PrefetchScalarGridSpec(
        num_scalar_prefetch=1,
        grid=(n,),
        in_specs=[
            pl.BlockSpec((1, e), lambda i, tok: (tok[i], 0),
                         pipeline_mode=pl.Buffered(4)),
        ],
        out_specs=pl.BlockSpec((1, e), lambda i, tok: (i, 0)),
    )
    return pl.pallas_call(
        functools.partial(_embed_row_kernel, scale=scale),
        out_shape=jax.ShapeDtypeStruct((n, e), emb_table.dtype),
        grid_spec=grid_spec,
        compiler_params=pltpu.CompilerParams(
            dimension_semantics=("arbitrary",)),
    )(tokens_flat, emb_table)


# ---------------------------------------------------------------------------
# Public wrapper.
# ---------------------------------------------------------------------------
def token_embedding(tokens: jax.Array, emb_table: jax.Array,
                    tile: int = 256) -> jax.Array:
    """tokens: [B, S] int, emb_table: [V, E] float32 -> [B, S, E] float32."""
    b, s = tokens.shape
    v, e = emb_table.shape
    n = b * s

    # Clamp ids (torch raises on OOB; an OOB data-dependent DMA is undefined).
    tokens_flat = jnp.clip(tokens.reshape(n).astype(jnp.int32), 0, v - 1)

    # Tile size: multiple of 8 sublanes, capped at `tile`, shrunk for tiny N.
    t = min(tile, max(8, pl.cdiv(n, 8) * 8))

    # VMEM budget gate (conservative so it also holds on v7x's 64 MiB VMEM):
    # resident table (assume double-buffered) + token/output tiles + one-hot.
    itemsize = jnp.dtype(emb_table.dtype).itemsize
    vmem_need = (2 * v * e * itemsize        # table buffers
                 + 2 * t * e * itemsize      # output tiles (double-buffered)
                 + 2 * t * 4                 # token-id tiles
                 + t * v * 4)                # one-hot intermediate
    use_vmem_path = (vmem_need <= 24 * 1024 * 1024) and (v <= 4096)

    if use_vmem_path:
        out_flat = _token_embedding_vmem(tokens_flat, emb_table, t)
    else:
        out_flat = _token_embedding_hbm(tokens_flat, emb_table)

    return out_flat.reshape(b, s, e)


if __name__ == "__main__":
    key = jax.random.PRNGKey(0)
    k_emb, k_tok = jax.random.split(key)

    vocab_size = 64
    emb_size = 32
    batch, seq = 2, 8

    # nn.Embedding default init is N(0, 1).
    emb_table = jax.random.normal(k_emb, (vocab_size, emb_size), dtype=jnp.float32)
    tokens = jax.random.randint(k_tok, (batch, seq), 0, vocab_size, dtype=jnp.int32)

    out = token_embedding(tokens, emb_table)
    out = jax.block_until_ready(out)

    # Reference: plain-JAX embedding lookup * sqrt(emb_size).
    ref = jnp.take(emb_table, tokens, axis=0) * math.sqrt(float(emb_size))
    assert out.shape == (batch, seq, emb_size)
    assert jnp.allclose(out, ref, atol=1e-5, rtol=1e-5), float(
        jnp.max(jnp.abs(out - ref)))

    print("KERNEL_OK")
</pallas_src>

<mosaic_0001>
module attributes {stable_mosaic.version = 11 : i64} {
  func.func @_embed_onehot_kernel(%arg0: i32, %arg1: memref<16x1xi32, #tpu.memory_space<vmem>>, %arg2: memref<64x32xf32, #tpu.memory_space<vmem>>, %arg3: memref<16x32xf32, #tpu.memory_space<vmem>>) attributes {dimension_semantics = [#tpu.dimension_semantics<parallel>], iteration_bounds = array<i64: 1>, scalar_prefetch = 0 : i64, scratch_operands = 0 : i64, tpu.core_type = #tpu.core_type<tc>, window_params = [{transform_indices = @transform_0, window_bounds = array<i64: 16, 1>}, {pipeline_mode = #tpu.pipeline_mode<synchronous>, transform_indices = @transform_1, window_bounds = array<i64: 64, 32>}, {transform_indices = @transform_2, window_bounds = array<i64: 16, 32>}]} {
    %c0 = arith.constant 0 : index
    %c0_0 = arith.constant 0 : index
    %0 = vector.load %arg1[%c0, %c0_0] : memref<16x1xi32, #tpu.memory_space<vmem>>, vector<16x1xi32>
    %1 = tpu.iota {dimensions = array<i32: 1>} : vector<16x64xi32>
    %2 = vector.broadcast %0 : vector<16x1xi32> to vector<16x64xi32>
    %3 = arith.cmpi eq, %2, %1 : vector<16x64xi32>
    %4 = arith.extui %3 : vector<16x64xi1> to vector<16x64xi32>
    %5 = arith.sitofp %4 : vector<16x64xi32> to vector<16x64xf32>
    %c0_1 = arith.constant 0 : index
    %c0_2 = arith.constant 0 : index
    %6 = vector.load %arg2[%c0_1, %c0_2] : memref<64x32xf32, #tpu.memory_space<vmem>>, vector<64x32xf32>
    %cst = arith.constant dense<0.000000e+00> : vector<16x32xf32>
    %7 = tpu.matmul %5, %6, %cst {dimension_numbers = #tpu.dot_dimension_numbers<[1], [0], [0], [1], [0, 0, 1, 1], [], []>} : vector<16x64xf32>, vector<64x32xf32>, vector<16x32xf32> -> vector<16x32xf32>
    %cst_3 = arith.constant 5.65685415 : f32
    %8 = vector.broadcast %cst_3 : f32 to vector<16x32xf32>
    %9 = arith.mulf %7, %8 : vector<16x32xf32>
    %c0_4 = arith.constant 0 : index
    %c0_5 = arith.constant 0 : index
    %10 = vector.load %arg3[%c0_4, %c0_5] : memref<16x32xf32, #tpu.memory_space<vmem>>, vector<16x32xf32>
    tpu.vector_store %arg3[%c0_4, %c0_5], %9 {strides = array<i32>} : memref<16x32xf32, #tpu.memory_space<vmem>>, vector<16x32xf32>,
    return
  }
  func.func @transform_0(%arg0: i32) -> (i32, i32) {
    %c0_i32 = arith.constant 0 : i32
    %c0_i32_0 = arith.constant 0 : i32
    return %arg0, %c0_i32 : i32, i32
  }
  func.func @transform_1(%arg0: i32) -> (i32, i32) {
    %c0_i32 = arith.constant 0 : i32
    %c0_i32_0 = arith.constant 0 : i32
    %c0_i32_1 = arith.constant 0 : i32
    return %c0_i32, %c0_i32_0 : i32, i32
  }
  func.func @transform_2(%arg0: i32) -> (i32, i32) {
    %c0_i32 = arith.constant 0 : i32
    %c0_i32_0 = arith.constant 0 : i32
    return %arg0, %c0_i32 : i32, i32
  }
}

</mosaic_0001>

<llo_original>
// kernel: tpu_custom_call.1
$region0: #{tpu_custom_call.1}
  #allocation0 [shape = 'u32[]', space=smem, size = 0x4, offset = 0x4, fixed_abs, tag = 'smem constant byte address 0x4 - core index']
  #allocation1 [shape = 'u32[144,128]{1,0:T(1,128)}', space=vmem, size = 0x12000, scoped, tag = 'internal scratch']
  %s0 = inlined_call_operand.vmem [shape: s32[16,1], index: 0, kind: input, shape index: {}]
  %s1 = inlined_call_operand.vmem [shape: f32[64,32], index: 1, kind: input, shape index: {}]
  %s2 = inlined_call_operand.hbm [shape: f32[16,32], index: 2, kind: output, shape index: {}]
  %s3 = sld [smem:[#allocation0]]
  $region18: #{tpu_custom_call.1} parent=0
    _
  %s5 = ssub.s32 1, %s3
  %s6 = scalar_select 0, %s5, %s3
  $region1: #{tpu_custom_call.1} parent=0
    #allocation2 [shape = 'u8[8192]{0}', space=vmem, size = 0x2000, scoped, tag = 'output window, operand 0, single buffered']
    #allocation3 [shape = 's32[1]{0}', space=sflag, size = 0x4, scoped, tag = 'scoped memory for tpu_custom_call.1']
    %7 = vsyncpa [#allocation3], 0
    // Predicated region
    $region2: #{tpu_custom_call.1} parent=1 // pred_check
      _
    $region3: #{tpu_custom_call.1} parent=1 // pred_check_branch
      %9 = sbr.rel (0) target = $region5
    $region4: #{tpu_custom_call.1} parent=1 // pred_region
      _
    $region5: #{tpu_custom_call.1} parent=1 // pred_fallthru
      _
    // Predicated region
    $region6: #{tpu_custom_call.1} parent=1 // pred_check
      _
    $region7: #{tpu_custom_call.1} parent=1 // pred_check_branch
      %11 = sbr.rel (0) target = $region9
    $region8: #{tpu_custom_call.1} parent=1 // pred_region
      _
    $region9: #{tpu_custom_call.1} parent=1 // pred_fallthru
      _
    %v12 = vld [vmem:[%s0] sm:$0xff]
    %v13 = vld [vmem:[%s0 + $0x8] sm:$0xff]
    %v14 = vlaneseq
    %v15 = vand.u32 %v14, 127
    %16 = vset.pattern.permute.xlu0 0
    %17 = vperm.xlu0 %16, %v12
    %v18 = vpop.permute.xlu0 %17
    %19 = vset.pattern.permute.xlu0 0
    %20 = vperm.xlu0 %19, %v13
    %v21 = vpop.permute.xlu0 %20
    %vm22 = vcmp.eq.s32.totalorder %v18, %v15
    %vm23 = vcmp.eq.s32.totalorder %v21, %v15
    %v24 = vsel %vm22, 1, 0
    %v25 = vsel %vm23, 1, 0
    %v26 = vcvt.s32.f32 %v24
    %v27 = vcvt.s32.f32 %v25
    %v28 = vld [vmem:[%s1] sm:$0xff]
    %v29 = vld [vmem:[%s1 + $0x8] sm:$0xff]
    %v30 = vld [vmem:[%s1 + $0x10] sm:$0xff]
    %v31 = vld [vmem:[%s1 + $0x18] sm:$0xff]
    %v32 = vld [vmem:[%s1 + $0x20] sm:$0xff]
    %v33 = vld [vmem:[%s1 + $0x28] sm:$0xff]
    %v34 = vld [vmem:[%s1 + $0x30] sm:$0xff]
    %v35 = vld [vmem:[%s1 + $0x38] sm:$0xff]
    %vm36 = vcmask 523264
    %v38 = vsel %vm36, %v26, 0
    %v41 = vsel %vm36, %v27, 0
    %43 = vmatprep.subr.mxu0 0.0
    %44 = vmatpush1.msra.mxu0 %v28
    %45 = vmatprep.subr.mxu0 0.0
    %46 = vmatpush1.msra.mxu0 %v29
    %47 = vmatprep.subr.mxu0 0.0
    %48 = vmatpush1.msra.mxu0 %v30
    %49 = vmatprep.subr.mxu0 0.0
    %50 = vmatpush1.msra.mxu0 %v31
    %51 = vmatprep.subr.mxu0 0.0
    %52 = vmatpush1.msra.mxu0 %v32
    %53 = vmatprep.subr.mxu0 0.0
    %54 = vmatpush1.msra.mxu0 %v33
    %55 = vmatprep.subr.mxu0 0.0
    %56 = vmatpush1.msra.mxu0 %v34
    %57 = vmatprep.subr.mxu0 0.0
    %58 = vmatpush1.msra.mxu0 %v35
    %59 = vmatprep.subr.mxu0 0.0
    %60 = vmatpush1.msra.mxu0 0.0
    %61 = vmatprep.subr.mxu0 0.0
    %62 = vmatpush1.msra.mxu0 0.0
    %63 = vmatprep.subr.mxu0 0.0
    %64 = vmatpush1.msra.mxu0 0.0
    %65 = vmatprep.subr.mxu0 0.0
    %66 = vmatpush1.msra.mxu0 0.0
    %67 = vmatprep.subr.mxu0 0.0
    %68 = vmatpush1.msra.mxu0 0.0
    %69 = vmatprep.subr.mxu0 0.0
    %70 = vmatpush1.msra.mxu0 0.0
    %71 = vmatprep.subr.mxu0 0.0
    %72 = vmatpush1.msra.mxu0 0.0
    %73 = vmatprep.subr.mxu0 0.0
    %74 = vmatpush1.msra.mxu0 0.0
    %75 = vmatprep.subr.mxu0 0.0
    %76 = vmatpush1.msra.mxu0 0.0
    %77 = vmatprep.subr.mxu0 0.0
    %78 = vmatpush1.msra.mxu0 0.0
    %79 = vmatprep.subr.mxu0 0.0
    %80 = vmatpush1.msra.mxu0 0.0
    %81 = vmatprep.subr.mxu0 0.0
    %82 = vmatpush1.msra.mxu0 0.0
    %83 = vmatprep.subr.mxu0 0.0
    %84 = vmatpush1.msra.mxu0 0.0
    %85 = vmatprep.subr.mxu0 0.0
    %86 = vmatpush1.msra.mxu0 0.0
    %87 = vmatprep.subr.mxu0 0.0
    %88 = vmatpush1.msra.mxu0 0.0
    %89 = vmatprep.subr.mxu0 0.0
    %90 = vmatpush1.msra.mxu0 0.0
    %91 = vmatprep.subr.mxu0 0.0
    %92 = vmatpush1.msra.mxu0 0.0
    %93 = vmatprep.subr.mxu0 0.0
    %94 = vmatpush1.msra.mxu0 0.0
    %95 = vmatprep.subr.mxu0 0.0
    %96 = vmatpush1.msra.mxu0 0.0
    %97 = vmatprep.subr.mxu0 0.0
    %98 = vmatpush1.msra.mxu0 0.0
    %99 = vmatprep.subr.mxu0 0.0
    %100 = vmatpush1.msra.mxu0 0.0
    %101 = vmatprep.subr.mxu0 0.0
    %102 = vmatpush1.msra.mxu0 0.0
    %103 = vmatprep.subr.mxu0 0.0
    %104 = vmatpush1.msra.mxu0 0.0
    %105 = vmatprep.subr.mxu0 0.0
    %106 = vmatpush1.msra.mxu0 0.0
    %107 = vmatprep.mubr.f32.mxu0 0.0
    %108 = vmatmul.mubr.f32.gmra.mrb[0].mxu0 %v38
    %v109 = vpop.f32.mrb[0].mxu0
    %v110 = vadd.f32 0.0, %v109
    %v111 = vpop.f32.mrb[0].mxu0
    %112 = vmatprep.mubr.f32.mxu0 0.0
    %113 = vmatmul.mubr.f32.gmra.mrb[0].mxu0 %v41
    %v114 = vpop.f32.mrb[0].mxu0
    %v115 = vadd.f32 0.0, %v114
    %v116 = vpop.f32.mrb[0].mxu0
    %117 = vdwg.mxu0
    %v118 = vmul.f32 %v110, 5.656854
    %v119 = vmul.f32 %v115, 5.656854
    %vm120 = vcmask 261120
    %121 = vst.msk [vmem:[#allocation2] sm:$0xff] %vm120, %v118
    %122 = vst.msk [vmem:[#allocation2 + $0x8] sm:$0xff] %vm120, %v119
    // Predicated region
    $region10: #{tpu_custom_call.1} parent=1 // pred_check
      _
    $region11: #{tpu_custom_call.1} parent=1 // pred_check_branch
      %124 = sbr.rel (0) target = $region13
    $region12: #{tpu_custom_call.1} parent=1 // pred_region
      %s126 = ssub.s32 256, 256
      %127 = vsyncadd [#allocation3], %s126
      %s128 = sshll.u32 [#allocation2], 4
      %s129 = int_to_ptr.vmem [resolvable:$true] %s128
      %134 = dma.vmem_to_hbm [thread:$0]  %s129, 256, %s2, [#allocation3], 128, 128, 8
    $region13: #{tpu_custom_call.1} parent=1 // pred_fallthru
      _
    // Predicated region
    $region14: #{tpu_custom_call.1} parent=1 // pred_check
      _
    $region15: #{tpu_custom_call.1} parent=1 // pred_check_branch
      %136 = sbr.rel (0) target = $region17
    $region16: #{tpu_custom_call.1} parent=1 // pred_region
      %137 = dma.done [#allocation3], 256
    $region17: #{tpu_custom_call.1} parent=1 // pred_fallthru
      _
    %138 = vsyncpa [#allocation3], 1

</llo_original>
